<compile_context>
chip_gen: v5e
topology: v5e:2x2
jax: 0.10.0
libtpu: 0.0.40
codegen_flags: <defaults>
</compile_context>

<pallas_src>
import math
import numpy as np
import jax
import jax.numpy as jnp
from jax import lax
from jax.experimental import pallas as pl
from jax.experimental.pallas import tpu as pltpu

HIDDEN = 32
N_HEADS = 4
HEAD_DIM = HIDDEN // N_HEADS
N_NODES = 8
INPUT_DIM = 16          # present in module signature, unused in forward
FFN = 512               # feed_forward_hidden hard-coded in the module
BN_EPS = 1e-5
ATTN_SCALE = 0.5 / float(HEAD_DIM)    # "/ (hidden // n_heads) * 0.5"


# ----------------------------------------------------------------------------
# Constant lane-permutation / grouping matrices (host-side, numpy).
# They let the per-node head attention be written purely as 2-D matmuls:
#
#   Q3[i,j,k] = Q[i, 8j+k]   K3[i,k,l] = K[i, 4k+l]   V3[i,d,h] = V[i, 4d+h]
#   compat[i,j,l] = scale * sum_k Q3[i,j,k] * K3[i,k,l]
#   scores        = softmax_l(compat)
#   attn_flat[i, 4d+j] = sum_h scores[i,j,h] * V[i, 4d+h]
#
# Expanded lane layouts (128 lanes):
#   Qtile[:, 32l+8j+k] = Q[:, 8j+k]      Kexp[:, 32l+8j+k] = K[:, 4k+l]
#   Sexp [:, 32j+4d+h] = s16[:, 4j+h]    Vtile[:, 32j+4d+h] = V[:, 4d+h]
# ----------------------------------------------------------------------------
def _build_lane_constants():
    f32 = np.float32
    m = np.arange(128)
    # interpretation of column m as 32*l + 8*j + k   (compat side)
    k_c = m % 8
    j_c = (m % 32) // 8
    l_c = m // 32
    # interpretation of column m as 32*j + 4*d + h   (output side)
    j_o = m // 32
    d_o = (m % 32) // 4
    h_o = m % 4

    r32 = np.arange(HIDDEN)
    # K -> Kexp :  sel_big[4k+l, 32l+8j+k] = 1
    sel_big = (r32[:, None] == (4 * k_c + l_c)[None, :]).astype(f32)       # (32,128)

    n16 = np.arange(N_HEADS * N_HEADS)
    j_n = n16 // 4
    s_n = n16 % 4
    # (Qtile*Kexp) -> compat16[:, 4j+l]   (scale folded in)
    m_big = ((j_c[:, None] == j_n[None, :]) &
             (l_c[:, None] == s_n[None, :])).astype(f32) * ATTN_SCALE       # (128,16)

    # per-4-lane-group sum replication for the softmax denominator
    block_ones = (n16[:, None] // 4 == n16[None, :] // 4).astype(f32)       # (16,16)

    # s16 -> Sexp :  sel_s[4j+h, 32j+4d+h] = 1 (all d)
    sel_s = ((j_n[:, None] == j_o[None, :]) &
             (s_n[:, None] == h_o[None, :])).astype(f32)                    # (16,128)

    c32 = np.arange(HIDDEN)
    d_t = c32 // 4
    j_t = c32 % 4
    # (Sexp*Vtile) -> attn_flat[:, 4d+j]
    p_big = ((d_o[:, None] == d_t[None, :]) &
             (j_o[:, None] == j_t[None, :])).astype(f32)                    # (128,32)

    return sel_big, m_big, block_ones, sel_s, p_big


# ----------------------------------------------------------------------------
# The single fused kernel
# ----------------------------------------------------------------------------
def _fused_kernel(h_ref, w1t_ref, b1_ref, w2t_ref, b2_ref,
                  wct_ref, bc_ref, wd_ref, bd_ref, gamma_ref, beta_ref,
                  wqkv_ref, mbig_ref, bones_ref, sels_ref, pbig_ref,
                  wfct_ref, wzrg_ref, uzr_ref, ugt_ref, wfc1t_ref, bfc1_ref,
                  o_ref):
    f32 = jnp.float32
    h0 = h_ref[...]                                               # (N, H)

    # ---- FFN_h_layer1 -> relu -> (dropout p=0) -> FFN_h_layer2 ----
    x = jnp.dot(h0, w1t_ref[...], preferred_element_type=f32) + b1_ref[...]
    x = jnp.maximum(x, 0.0)
    x = jnp.dot(x, w2t_ref[...], preferred_element_type=f32) + b2_ref[...]
    hh = x * jax.nn.sigmoid(h0)                                   # h * sigmoid(h_a)
    re = hh

    # ---- conv1d (k=1) == dense; depthwise conv1d == per-channel affine ----
    hc = jnp.dot(hh, wct_ref[...], preferred_element_type=f32) + bc_ref[...]
    hc = hc * jax.nn.sigmoid(hh)
    hc = hc * wd_ref[...] + bd_ref[...]

    # ---- BatchNorm1d, training-mode batch statistics (biased variance) ----
    mean = jnp.mean(hc, axis=0, keepdims=True)
    var = jnp.mean((hc - mean) * (hc - mean), axis=0, keepdims=True)
    hc = gamma_ref[...] * (hc - mean) * lax.rsqrt(var + BN_EPS) + beta_ref[...]

    hc = jnp.maximum(hc, 0.0)
    hc = jnp.dot(hc, wct_ref[...], preferred_element_type=f32) + bc_ref[...]
    hc = re + hc                                                  # residual

    # ---- multi-head "compatibility" attention (all 2-D, lane-dense) ----
    qkv = jnp.dot(hc, wqkv_ref[...], preferred_element_type=f32)  # (N, 384)
    qtile = qkv[:, 0:128]
    kexp = qkv[:, 128:256]
    vtile = qkv[:, 256:384]

    compat16 = jnp.dot(qtile * kexp, mbig_ref[...],
                       preferred_element_type=f32)                # (N, 16), scale folded
    mrow = jnp.max(compat16, axis=1, keepdims=True)               # const per row => valid shift
    e = jnp.exp(compat16 - mrow)
    denom = jnp.dot(e, bones_ref[...], preferred_element_type=f32)
    s16 = e * pl.reciprocal(denom, approx=True)                   # softmax over each 4-group

    sexp = jnp.dot(s16, sels_ref[...], preferred_element_type=f32)        # (N, 128)
    attn = jnp.dot(sexp * vtile, pbig_ref[...], preferred_element_type=f32)  # (N, 32)
    a = jnp.dot(attn, wfct_ref[...], preferred_element_type=f32)  # h_attn_out

    # ---- GRU-style gating + fc1 ----
    zrg = jnp.dot(hc, wzrg_ref[...], preferred_element_type=f32)  # (N, 96) = [z|r|g]
    azr = jnp.dot(a, uzr_ref[...], preferred_element_type=f32)    # (N, 64) = [z|r]
    z = jax.nn.sigmoid(zrg[:, 0:HIDDEN] + azr[:, 0:HIDDEN])
    r = jax.nn.sigmoid(zrg[:, HIDDEN:2 * HIDDEN] + azr[:, HIDDEN:2 * HIDDEN])
    h_hat = jnp.tanh(zrg[:, 2 * HIDDEN:3 * HIDDEN]
                     + jnp.dot(r * a, ugt_ref[...], preferred_element_type=f32))
    hout = (1.0 - z) * a + z * h_hat
    hout = hout * jax.nn.sigmoid(a)
    o_ref[...] = jnp.dot(hout, wfc1t_ref[...], preferred_element_type=f32) + bfc1_ref[...]


def mha_layer_forward(h, fp):
    return pl.pallas_call(
        _fused_kernel,
        out_shape=jax.ShapeDtypeStruct((N_NODES, HIDDEN), jnp.float32),
    )(h, fp["w1t"], fp["b1"], fp["w2t"], fp["b2"],
      fp["wct"], fp["bc"], fp["wd"], fp["bd"], fp["gamma"], fp["beta"],
      fp["wqkv"], fp["mbig"], fp["bones"], fp["sels"], fp["pbig"],
      fp["wfct"], fp["wzrg"], fp["uzr"], fp["ugt"], fp["wfc1t"], fp["bfc1"])


# ----------------------------------------------------------------------------
# Parameter setup
# ----------------------------------------------------------------------------
def init_params(key):
    keys = list(jax.random.split(key, 24))
    it = iter(keys)

    def lin_w(out_dim, in_dim):
        bound = 1.0 / math.sqrt(in_dim)
        return jax.random.uniform(next(it), (out_dim, in_dim), jnp.float32, -bound, bound)

    def lin_b(dim, fan_in):
        bound = 1.0 / math.sqrt(fan_in)
        return jax.random.uniform(next(it), (1, dim), jnp.float32, -bound, bound)

    W1 = lin_w(FFN, HIDDEN);    b1 = lin_b(FFN, HIDDEN)
    W2 = lin_w(HIDDEN, FFN);    b2 = lin_b(HIDDEN, FFN)
    Wc = lin_w(HIDDEN, HIDDEN); bc = lin_b(HIDDEN, HIDDEN)          # conv1d k=1
    wd = jax.random.uniform(next(it), (1, HIDDEN), jnp.float32, -1.0, 1.0)  # depthwise
    bd = jax.random.uniform(next(it), (1, HIDDEN), jnp.float32, -1.0, 1.0)
    Wq = lin_w(HIDDEN, HIDDEN); Wk = lin_w(HIDDEN, HIDDEN); Wv = lin_w(HIDDEN, HIDDEN)
    Wfc = lin_w(HIDDEN, HIDDEN)
    Wwz = lin_w(HIDDEN, HIDDEN); Wuz = lin_w(HIDDEN, HIDDEN)
    Wwr = lin_w(HIDDEN, HIDDEN); Wur = lin_w(HIDDEN, HIDDEN)
    Wwg = lin_w(HIDDEN, HIDDEN); Wug = lin_w(HIDDEN, HIDDEN)
    Wfc1 = lin_w(HIDDEN, HIDDEN); bfc1 = lin_b(HIDDEN, HIDDEN)

    return dict(
        w1t=W1.T, b1=b1, w2t=W2.T, b2=b2,
        wct=Wc.T, bc=bc, wd=wd, bd=bd,
        gamma=jnp.ones((1, HIDDEN), jnp.float32),
        beta=jnp.zeros((1, HIDDEN), jnp.float32),
        wqt=Wq.T, wkt=Wk.T, wvt=Wv.T, wfct=Wfc.T,
        wzt=Wwz.T, uzt=Wuz.T, wrt=Wwr.T, urt=Wur.T, wgt=Wwg.T, ugt=Wug.T,
        wfc1t=Wfc1.T, bfc1=bfc1,
    )


def prepare_fused_params(p):
    """One-time host-side fusion of weights + lane-constant matrices."""
    sel_big, m_big, block_ones, sel_s, p_big = _build_lane_constants()
    sel_big = jnp.asarray(sel_big)
    wqkv = jnp.concatenate(
        [jnp.tile(p["wqt"], (1, N_HEADS)),      # Qtile = hc @ tile(WqT)
         p["wkt"] @ sel_big,                    # Kexp  = hc @ (WkT @ SelBig)
         jnp.tile(p["wvt"], (1, N_HEADS))],     # Vtile = hc @ tile(WvT)
        axis=1)                                 # (32, 384)
    fp = dict(p)
    fp.update(
        wqkv=wqkv,
        mbig=jnp.asarray(m_big),
        bones=jnp.asarray(block_ones),
        sels=jnp.asarray(sel_s),
        pbig=jnp.asarray(p_big),
        wzrg=jnp.concatenate([p["wzt"], p["wrt"], p["wgt"]], axis=1),   # (32, 96)
        uzr=jnp.concatenate([p["uzt"], p["urt"]], axis=1),              # (32, 64)
    )
    return fp


# ----------------------------------------------------------------------------
# Pure-JAX reference (mirrors the PyTorch forward exactly)
# ----------------------------------------------------------------------------
def reference_forward(h, p):
    h0 = h
    x = jax.nn.relu(h @ p["w1t"] + p["b1"])
    x = x @ p["w2t"] + p["b2"]
    hh = x * jax.nn.sigmoid(h0)
    re = hh
    hc = hh @ p["wct"] + p["bc"]
    hc = hc * jax.nn.sigmoid(hh)
    hc = hc * p["wd"] + p["bd"]
    mean = hc.mean(axis=0, keepdims=True)
    var = ((hc - mean) ** 2).mean(axis=0, keepdims=True)
    hc = p["gamma"] * (hc - mean) / jnp.sqrt(var + BN_EPS) + p["beta"]
    hc = jax.nn.relu(hc)
    hc = hc @ p["wct"] + p["bc"]
    hc = re + hc
    Q = hc @ p["wqt"]; K = hc @ p["wkt"]; V = hc @ p["wvt"]
    Q3 = Q.reshape(N_NODES, N_HEADS, HEAD_DIM)
    K3 = K.reshape(N_NODES, HEAD_DIM, N_HEADS)
    compat = jnp.einsum("ijk,ikl->ijl", Q3, K3) / HEAD_DIM * 0.5
    scores = jax.nn.softmax(compat, axis=-1)
    V3 = V.reshape(N_NODES, HEAD_DIM, N_HEADS)
    out = jnp.einsum("blh,bdh->bld", scores, V3)
    out = out.transpose(0, 2, 1).reshape(N_NODES, HIDDEN)
    a = out @ p["wfct"]
    z = jax.nn.sigmoid(hc @ p["wzt"] + a @ p["uzt"])
    r = jax.nn.sigmoid(hc @ p["wrt"] + a @ p["urt"])
    h_hat = jnp.tanh(hc @ p["wgt"] + (r * a) @ p["ugt"])
    hout = (1.0 - z) * a + z * h_hat
    hout = hout * jax.nn.sigmoid(a)
    return hout @ p["wfc1t"] + p["bfc1"]


if __name__ == "__main__":
    key = jax.random.PRNGKey(0)
    kp, kh = jax.random.split(key)
    params = init_params(kp)
    fused = prepare_fused_params(params)
    h = jax.random.normal(kh, (N_NODES, HIDDEN), jnp.float32)

    out = mha_layer_forward(h, fused)
    out = jax.block_until_ready(out)

    ref = reference_forward(h, params)
    if not np.allclose(np.asarray(out), np.asarray(ref), atol=5e-3, rtol=5e-3):
        err = float(jnp.max(jnp.abs(out - ref)))
        raise AssertionError(f"Pallas output mismatch vs reference, max abs err={err}")

    # TODO(synk): IniEmbed / LinTra / FFN_h_layer3/4 / batch_norm1_h / batch_norm3_h /
    # layer_norm / fc(LayerNorm) exist in __init__ but are unused in forward; omitted.
    print("KERNEL_OK")
</pallas_src>

<mosaic_0001>
module attributes {stable_mosaic.version = 11 : i64} {
  func.func @_fused_kernel(%arg0: memref<8x32xf32, #tpu.memory_space<vmem>>, %arg1: memref<32x512xf32, #tpu.memory_space<vmem>>, %arg2: memref<1x512xf32, #tpu.memory_space<vmem>>, %arg3: memref<512x32xf32, #tpu.memory_space<vmem>>, %arg4: memref<1x32xf32, #tpu.memory_space<vmem>>, %arg5: memref<32x32xf32, #tpu.memory_space<vmem>>, %arg6: memref<1x32xf32, #tpu.memory_space<vmem>>, %arg7: memref<1x32xf32, #tpu.memory_space<vmem>>, %arg8: memref<1x32xf32, #tpu.memory_space<vmem>>, %arg9: memref<1x32xf32, #tpu.memory_space<vmem>>, %arg10: memref<1x32xf32, #tpu.memory_space<vmem>>, %arg11: memref<32x384xf32, #tpu.memory_space<vmem>>, %arg12: memref<128x16xf32, #tpu.memory_space<vmem>>, %arg13: memref<16x16xf32, #tpu.memory_space<vmem>>, %arg14: memref<16x128xf32, #tpu.memory_space<vmem>>, %arg15: memref<128x32xf32, #tpu.memory_space<vmem>>, %arg16: memref<32x32xf32, #tpu.memory_space<vmem>>, %arg17: memref<32x96xf32, #tpu.memory_space<vmem>>, %arg18: memref<32x64xf32, #tpu.memory_space<vmem>>, %arg19: memref<32x32xf32, #tpu.memory_space<vmem>>, %arg20: memref<32x32xf32, #tpu.memory_space<vmem>>, %arg21: memref<1x32xf32, #tpu.memory_space<vmem>>, %arg22: memref<8x32xf32, #tpu.memory_space<vmem>>) attributes {dimension_semantics = [], scalar_prefetch = 0 : i64, scratch_operands = 0 : i64, tpu.core_type = #tpu.core_type<tc>} {
    %c0 = arith.constant 0 : index
    %c0_0 = arith.constant 0 : index
    %0 = vector.load %arg0[%c0, %c0_0] : memref<8x32xf32, #tpu.memory_space<vmem>>, vector<8x32xf32>
    %c0_1 = arith.constant 0 : index
    %c0_2 = arith.constant 0 : index
    %1 = vector.load %arg1[%c0_1, %c0_2] : memref<32x512xf32, #tpu.memory_space<vmem>>, vector<32x512xf32>
    %cst = arith.constant dense<0.000000e+00> : vector<8x512xf32>
    %2 = tpu.matmul %0, %1, %cst {dimension_numbers = #tpu.dot_dimension_numbers<[1], [0], [0], [1], [0, 0, 1, 1], [], []>} : vector<8x32xf32>, vector<32x512xf32>, vector<8x512xf32> -> vector<8x512xf32>
    %c0_3 = arith.constant 0 : index
    %c0_4 = arith.constant 0 : index
    %3 = vector.load %arg2[%c0_3, %c0_4] : memref<1x512xf32, #tpu.memory_space<vmem>>, vector<1x512xf32>
    %4 = vector.broadcast %3 : vector<1x512xf32> to vector<8x512xf32>
    %5 = arith.addf %2, %4 : vector<8x512xf32>
    %cst_5 = arith.constant 0.000000e+00 : f32
    %6 = vector.broadcast %cst_5 : f32 to vector<8x512xf32>
    %7 = arith.maximumf %5, %6 : vector<8x512xf32>
    %c0_6 = arith.constant 0 : index
    %c0_7 = arith.constant 0 : index
    %8 = vector.load %arg3[%c0_6, %c0_7] : memref<512x32xf32, #tpu.memory_space<vmem>>, vector<512x32xf32>
    %cst_8 = arith.constant dense<0.000000e+00> : vector<8x32xf32>
    %9 = tpu.matmul %7, %8, %cst_8 {dimension_numbers = #tpu.dot_dimension_numbers<[1], [0], [0], [1], [0, 0, 1, 1], [], []>} : vector<8x512xf32>, vector<512x32xf32>, vector<8x32xf32> -> vector<8x32xf32>
    %c0_9 = arith.constant 0 : index
    %c0_10 = arith.constant 0 : index
    %10 = vector.load %arg4[%c0_9, %c0_10] : memref<1x32xf32, #tpu.memory_space<vmem>>, vector<1x32xf32>
    %11 = vector.broadcast %10 : vector<1x32xf32> to vector<8x32xf32>
    %12 = arith.addf %9, %11 : vector<8x32xf32>
    %13 = arith.negf %0 : vector<8x32xf32>
    %14 = math.exp %13 : vector<8x32xf32>
    %cst_11 = arith.constant 1.000000e+00 : f32
    %15 = vector.broadcast %cst_11 : f32 to vector<8x32xf32>
    %16 = arith.addf %15, %14 : vector<8x32xf32>
    %17 = arith.divf %15, %16 : vector<8x32xf32>
    %18 = arith.mulf %12, %17 : vector<8x32xf32>
    %c0_12 = arith.constant 0 : index
    %c0_13 = arith.constant 0 : index
    %19 = vector.load %arg5[%c0_12, %c0_13] : memref<32x32xf32, #tpu.memory_space<vmem>>, vector<32x32xf32>
    %cst_14 = arith.constant dense<0.000000e+00> : vector<8x32xf32>
    %20 = tpu.matmul %18, %19, %cst_14 {dimension_numbers = #tpu.dot_dimension_numbers<[1], [0], [0], [1], [0, 0, 1, 1], [], []>} : vector<8x32xf32>, vector<32x32xf32>, vector<8x32xf32> -> vector<8x32xf32>
    %c0_15 = arith.constant 0 : index
    %c0_16 = arith.constant 0 : index
    %21 = vector.load %arg6[%c0_15, %c0_16] : memref<1x32xf32, #tpu.memory_space<vmem>>, vector<1x32xf32>
    %22 = vector.broadcast %21 : vector<1x32xf32> to vector<8x32xf32>
    %23 = arith.addf %20, %22 : vector<8x32xf32>
    %24 = arith.negf %18 : vector<8x32xf32>
    %25 = math.exp %24 : vector<8x32xf32>
    %cst_17 = arith.constant 1.000000e+00 : f32
    %26 = vector.broadcast %cst_17 : f32 to vector<8x32xf32>
    %27 = arith.addf %26, %25 : vector<8x32xf32>
    %28 = arith.divf %26, %27 : vector<8x32xf32>
    %29 = arith.mulf %23, %28 : vector<8x32xf32>
    %c0_18 = arith.constant 0 : index
    %c0_19 = arith.constant 0 : index
    %30 = vector.load %arg7[%c0_18, %c0_19] : memref<1x32xf32, #tpu.memory_space<vmem>>, vector<1x32xf32>
    %31 = vector.broadcast %30 : vector<1x32xf32> to vector<8x32xf32>
    %32 = arith.mulf %29, %31 : vector<8x32xf32>
    %c0_20 = arith.constant 0 : index
    %c0_21 = arith.constant 0 : index
    %33 = vector.load %arg8[%c0_20, %c0_21] : memref<1x32xf32, #tpu.memory_space<vmem>>, vector<1x32xf32>
    %34 = vector.broadcast %33 : vector<1x32xf32> to vector<8x32xf32>
    %35 = arith.addf %32, %34 : vector<8x32xf32>
    %cst_22 = arith.constant dense<0.000000e+00> : vector<32xf32>
    %36 = vector.multi_reduction <add>, %35, %cst_22 [0] : vector<8x32xf32> to vector<32xf32>
    %37 = vector.shape_cast %36 : vector<32xf32> to vector<1x32xf32>
    %cst_23 = arith.constant 8.000000e+00 : f32
    %38 = vector.broadcast %cst_23 : f32 to vector<1x32xf32>
    %39 = arith.divf %37, %38 : vector<1x32xf32>
    %40 = vector.broadcast %39 : vector<1x32xf32> to vector<8x32xf32>
    %41 = arith.subf %35, %40 : vector<8x32xf32>
    %42 = vector.broadcast %39 : vector<1x32xf32> to vector<8x32xf32>
    %43 = arith.subf %35, %42 : vector<8x32xf32>
    %44 = arith.mulf %41, %43 : vector<8x32xf32>
    %cst_24 = arith.constant dense<0.000000e+00> : vector<32xf32>
    %45 = vector.multi_reduction <add>, %44, %cst_24 [0] : vector<8x32xf32> to vector<32xf32>
    %46 = vector.shape_cast %45 : vector<32xf32> to vector<1x32xf32>
    %cst_25 = arith.constant 8.000000e+00 : f32
    %47 = vector.broadcast %cst_25 : f32 to vector<1x32xf32>
    %48 = arith.divf %46, %47 : vector<1x32xf32>
    %c0_26 = arith.constant 0 : index
    %c0_27 = arith.constant 0 : index
    %49 = vector.load %arg9[%c0_26, %c0_27] : memref<1x32xf32, #tpu.memory_space<vmem>>, vector<1x32xf32>
    %50 = vector.broadcast %39 : vector<1x32xf32> to vector<8x32xf32>
    %51 = arith.subf %35, %50 : vector<8x32xf32>
    %52 = vector.broadcast %49 : vector<1x32xf32> to vector<8x32xf32>
    %53 = arith.mulf %52, %51 : vector<8x32xf32>
    %cst_28 = arith.constant 9.99999974E-6 : f32
    %54 = vector.broadcast %cst_28 : f32 to vector<1x32xf32>
    %55 = arith.addf %48, %54 : vector<1x32xf32>
    %56 = math.rsqrt %55 : vector<1x32xf32>
    %57 = vector.broadcast %56 : vector<1x32xf32> to vector<8x32xf32>
    %58 = arith.mulf %53, %57 : vector<8x32xf32>
    %c0_29 = arith.constant 0 : index
    %c0_30 = arith.constant 0 : index
    %59 = vector.load %arg10[%c0_29, %c0_30] : memref<1x32xf32, #tpu.memory_space<vmem>>, vector<1x32xf32>
    %60 = vector.broadcast %59 : vector<1x32xf32> to vector<8x32xf32>
    %61 = arith.addf %58, %60 : vector<8x32xf32>
    %cst_31 = arith.constant 0.000000e+00 : f32
    %62 = vector.broadcast %cst_31 : f32 to vector<8x32xf32>
    %63 = arith.maximumf %61, %62 : vector<8x32xf32>
    %c0_32 = arith.constant 0 : index
    %c0_33 = arith.constant 0 : index
    %64 = vector.load %arg5[%c0_32, %c0_33] : memref<32x32xf32, #tpu.memory_space<vmem>>, vector<32x32xf32>
    %cst_34 = arith.constant dense<0.000000e+00> : vector<8x32xf32>
    %65 = tpu.matmul %63, %64, %cst_34 {dimension_numbers = #tpu.dot_dimension_numbers<[1], [0], [0], [1], [0, 0, 1, 1], [], []>} : vector<8x32xf32>, vector<32x32xf32>, vector<8x32xf32> -> vector<8x32xf32>
    %c0_35 = arith.constant 0 : index
    %c0_36 = arith.constant 0 : index
    %66 = vector.load %arg6[%c0_35, %c0_36] : memref<1x32xf32, #tpu.memory_space<vmem>>, vector<1x32xf32>
    %67 = vector.broadcast %66 : vector<1x32xf32> to vector<8x32xf32>
    %68 = arith.addf %65, %67 : vector<8x32xf32>
    %69 = arith.addf %18, %68 : vector<8x32xf32>
    %c0_37 = arith.constant 0 : index
    %c0_38 = arith.constant 0 : index
    %70 = vector.load %arg11[%c0_37, %c0_38] : memref<32x384xf32, #tpu.memory_space<vmem>>, vector<32x384xf32>
    %cst_39 = arith.constant dense<0.000000e+00> : vector<8x384xf32>
    %71 = tpu.matmul %69, %70, %cst_39 {dimension_numbers = #tpu.dot_dimension_numbers<[1], [0], [0], [1], [0, 0, 1, 1], [], []>} : vector<8x32xf32>, vector<32x384xf32>, vector<8x384xf32> -> vector<8x384xf32>
    %72 = vector.extract_strided_slice %71 {offsets = [0, 0], sizes = [8, 128], strides = [1, 1]} : vector<8x384xf32> to vector<8x128xf32>
    %73 = vector.extract_strided_slice %71 {offsets = [0, 128], sizes = [8, 128], strides = [1, 1]} : vector<8x384xf32> to vector<8x128xf32>
    %74 = vector.extract_strided_slice %71 {offsets = [0, 256], sizes = [8, 128], strides = [1, 1]} : vector<8x384xf32> to vector<8x128xf32>
    %75 = arith.mulf %72, %73 : vector<8x128xf32>
    %c0_40 = arith.constant 0 : index
    %c0_41 = arith.constant 0 : index
    %76 = vector.load %arg12[%c0_40, %c0_41] : memref<128x16xf32, #tpu.memory_space<vmem>>, vector<128x16xf32>
    %cst_42 = arith.constant dense<0.000000e+00> : vector<8x16xf32>
    %77 = tpu.matmul %75, %76, %cst_42 {dimension_numbers = #tpu.dot_dimension_numbers<[1], [0], [0], [1], [0, 0, 1, 1], [], []>} : vector<8x128xf32>, vector<128x16xf32>, vector<8x16xf32> -> vector<8x16xf32>
    %cst_43 = arith.constant dense<0xFF800000> : vector<8xf32>
    %78 = vector.multi_reduction <maximumf>, %77, %cst_43 [1] : vector<8x16xf32> to vector<8xf32>
    %79 = vector.shape_cast %78 : vector<8xf32> to vector<8x1xf32>
    %80 = vector.broadcast %79 : vector<8x1xf32> to vector<8x16xf32>
    %81 = arith.subf %77, %80 : vector<8x16xf32>
    %82 = math.exp %81 : vector<8x16xf32>
    %c0_44 = arith.constant 0 : index
    %c0_45 = arith.constant 0 : index
    %83 = vector.load %arg13[%c0_44, %c0_45] : memref<16x16xf32, #tpu.memory_space<vmem>>, vector<16x16xf32>
    %cst_46 = arith.constant dense<0.000000e+00> : vector<8x16xf32>
    %84 = tpu.matmul %82, %83, %cst_46 {dimension_numbers = #tpu.dot_dimension_numbers<[1], [0], [0], [1], [0, 0, 1, 1], [], []>} : vector<8x16xf32>, vector<16x16xf32>, vector<8x16xf32> -> vector<8x16xf32>
    %85 = tpu.reciprocal %84 {approx = true} : vector<8x16xf32> -> vector<8x16xf32>
    %86 = arith.mulf %82, %85 : vector<8x16xf32>
    %c0_47 = arith.constant 0 : index
    %c0_48 = arith.constant 0 : index
    %87 = vector.load %arg14[%c0_47, %c0_48] : memref<16x128xf32, #tpu.memory_space<vmem>>, vector<16x128xf32>
    %cst_49 = arith.constant dense<0.000000e+00> : vector<8x128xf32>
    %88 = tpu.matmul %86, %87, %cst_49 {dimension_numbers = #tpu.dot_dimension_numbers<[1], [0], [0], [1], [0, 0, 1, 1], [], []>} : vector<8x16xf32>, vector<16x128xf32>, vector<8x128xf32> -> vector<8x128xf32>
    %89 = arith.mulf %88, %74 : vector<8x128xf32>
    %c0_50 = arith.constant 0 : index
    %c0_51 = arith.constant 0 : index
    %90 = vector.load %arg15[%c0_50, %c0_51] : memref<128x32xf32, #tpu.memory_space<vmem>>, vector<128x32xf32>
    %cst_52 = arith.constant dense<0.000000e+00> : vector<8x32xf32>
    %91 = tpu.matmul %89, %90, %cst_52 {dimension_numbers = #tpu.dot_dimension_numbers<[1], [0], [0], [1], [0, 0, 1, 1], [], []>} : vector<8x128xf32>, vector<128x32xf32>, vector<8x32xf32> -> vector<8x32xf32>
    %c0_53 = arith.constant 0 : index
    %c0_54 = arith.constant 0 : index
    %92 = vector.load %arg16[%c0_53, %c0_54] : memref<32x32xf32, #tpu.memory_space<vmem>>, vector<32x32xf32>
    %cst_55 = arith.constant dense<0.000000e+00> : vector<8x32xf32>
    %93 = tpu.matmul %91, %92, %cst_55 {dimension_numbers = #tpu.dot_dimension_numbers<[1], [0], [0], [1], [0, 0, 1, 1], [], []>} : vector<8x32xf32>, vector<32x32xf32>, vector<8x32xf32> -> vector<8x32xf32>
    %c0_56 = arith.constant 0 : index
    %c0_57 = arith.constant 0 : index
    %94 = vector.load %arg17[%c0_56, %c0_57] : memref<32x96xf32, #tpu.memory_space<vmem>>, vector<32x96xf32>
    %cst_58 = arith.constant dense<0.000000e+00> : vector<8x96xf32>
    %95 = tpu.matmul %69, %94, %cst_58 {dimension_numbers = #tpu.dot_dimension_numbers<[1], [0], [0], [1], [0, 0, 1, 1], [], []>} : vector<8x32xf32>, vector<32x96xf32>, vector<8x96xf32> -> vector<8x96xf32>
    %c0_59 = arith.constant 0 : index
    %c0_60 = arith.constant 0 : index
    %96 = vector.load %arg18[%c0_59, %c0_60] : memref<32x64xf32, #tpu.memory_space<vmem>>, vector<32x64xf32>
    %cst_61 = arith.constant dense<0.000000e+00> : vector<8x64xf32>
    %97 = tpu.matmul %93, %96, %cst_61 {dimension_numbers = #tpu.dot_dimension_numbers<[1], [0], [0], [1], [0, 0, 1, 1], [], []>} : vector<8x32xf32>, vector<32x64xf32>, vector<8x64xf32> -> vector<8x64xf32>
    %98 = vector.extract_strided_slice %95 {offsets = [0, 0], sizes = [8, 32], strides = [1, 1]} : vector<8x96xf32> to vector<8x32xf32>
    %99 = vector.extract_strided_slice %97 {offsets = [0, 0], sizes = [8, 32], strides = [1, 1]} : vector<8x64xf32> to vector<8x32xf32>
    %100 = arith.addf %98, %99 : vector<8x32xf32>
    %101 = arith.negf %100 : vector<8x32xf32>
    %102 = math.exp %101 : vector<8x32xf32>
    %cst_62 = arith.constant 1.000000e+00 : f32
    %103 = vector.broadcast %cst_62 : f32 to vector<8x32xf32>
    %104 = arith.addf %103, %102 : vector<8x32xf32>
    %105 = arith.divf %103, %104 : vector<8x32xf32>
    %106 = vector.extract_strided_slice %95 {offsets = [0, 32], sizes = [8, 32], strides = [1, 1]} : vector<8x96xf32> to vector<8x32xf32>
    %107 = vector.extract_strided_slice %97 {offsets = [0, 32], sizes = [8, 32], strides = [1, 1]} : vector<8x64xf32> to vector<8x32xf32>
    %108 = arith.addf %106, %107 : vector<8x32xf32>
    %109 = arith.negf %108 : vector<8x32xf32>
    %110 = math.exp %109 : vector<8x32xf32>
    %cst_63 = arith.constant 1.000000e+00 : f32
    %111 = vector.broadcast %cst_63 : f32 to vector<8x32xf32>
    %112 = arith.addf %111, %110 : vector<8x32xf32>
    %113 = arith.divf %111, %112 : vector<8x32xf32>
    %114 = vector.extract_strided_slice %95 {offsets = [0, 64], sizes = [8, 32], strides = [1, 1]} : vector<8x96xf32> to vector<8x32xf32>
    %115 = arith.mulf %113, %93 : vector<8x32xf32>
    %c0_64 = arith.constant 0 : index
    %c0_65 = arith.constant 0 : index
    %116 = vector.load %arg19[%c0_64, %c0_65] : memref<32x32xf32, #tpu.memory_space<vmem>>, vector<32x32xf32>
    %cst_66 = arith.constant dense<0.000000e+00> : vector<8x32xf32>
    %117 = tpu.matmul %115, %116, %cst_66 {dimension_numbers = #tpu.dot_dimension_numbers<[1], [0], [0], [1], [0, 0, 1, 1], [], []>} : vector<8x32xf32>, vector<32x32xf32>, vector<8x32xf32> -> vector<8x32xf32>
    %118 = arith.addf %114, %117 : vector<8x32xf32>
    %119 = math.tanh %118 : vector<8x32xf32>
    %cst_67 = arith.constant 1.000000e+00 : f32
    %120 = vector.broadcast %cst_67 : f32 to vector<8x32xf32>
    %121 = arith.subf %120, %105 : vector<8x32xf32>
    %122 = arith.mulf %121, %93 : vector<8x32xf32>
    %123 = arith.mulf %105, %119 : vector<8x32xf32>
    %124 = arith.addf %122, %123 : vector<8x32xf32>
    %125 = arith.negf %93 : vector<8x32xf32>
    %126 = math.exp %125 : vector<8x32xf32>
    %cst_68 = arith.constant 1.000000e+00 : f32
    %127 = vector.broadcast %cst_68 : f32 to vector<8x32xf32>
    %128 = arith.addf %127, %126 : vector<8x32xf32>
    %129 = arith.divf %127, %128 : vector<8x32xf32>
    %130 = arith.mulf %124, %129 : vector<8x32xf32>
    %c0_69 = arith.constant 0 : index
    %c0_70 = arith.constant 0 : index
    %131 = vector.load %arg20[%c0_69, %c0_70] : memref<32x32xf32, #tpu.memory_space<vmem>>, vector<32x32xf32>
    %cst_71 = arith.constant dense<0.000000e+00> : vector<8x32xf32>
    %132 = tpu.matmul %130, %131, %cst_71 {dimension_numbers = #tpu.dot_dimension_numbers<[1], [0], [0], [1], [0, 0, 1, 1], [], []>} : vector<8x32xf32>, vector<32x32xf32>, vector<8x32xf32> -> vector<8x32xf32>
    %c0_72 = arith.constant 0 : index
    %c0_73 = arith.constant 0 : index
    %133 = vector.load %arg21[%c0_72, %c0_73] : memref<1x32xf32, #tpu.memory_space<vmem>>, vector<1x32xf32>
    %134 = vector.broadcast %133 : vector<1x32xf32> to vector<8x32xf32>
    %135 = arith.addf %132, %134 : vector<8x32xf32>
    %c0_74 = arith.constant 0 : index
    %c0_75 = arith.constant 0 : index
    %136 = vector.load %arg22[%c0_74, %c0_75] : memref<8x32xf32, #tpu.memory_space<vmem>>, vector<8x32xf32>
    tpu.vector_store %arg22[%c0_74, %c0_75], %135 {strides = array<i32>} : memref<8x32xf32, #tpu.memory_space<vmem>>, vector<8x32xf32>,
    return
  }
}

</mosaic_0001>

<llo_original>
// kernel: tpu_custom_call.1
$region0: #{tpu_custom_call.1}
  #allocation0 [shape = 'u32[]', space=smem, size = 0x4, offset = 0x4, fixed_abs, tag = 'smem constant byte address 0x4 - core index']
  #allocation1 [shape = 'u32[72,128]{1,0:T(1,128)}', space=vmem, size = 0x9000, scoped, tag = 'internal scratch']
  %s0 = inlined_call_operand.vmem [shape: f32[8,32], index: 0, kind: input, shape index: {}]
  %s1 = inlined_call_operand.vmem [shape: f32[32,512], index: 1, kind: input, shape index: {}]
  %s2 = inlined_call_operand.vmem [shape: f32[1,512], index: 2, kind: input, shape index: {}]
  %s3 = inlined_call_operand.vmem [shape: f32[512,32], index: 3, kind: input, shape index: {}]
  %s4 = inlined_call_operand.vmem [shape: f32[1,32], index: 4, kind: input, shape index: {}]
  %s5 = inlined_call_operand.vmem [shape: f32[32,32], index: 5, kind: input, shape index: {}]
  %s6 = inlined_call_operand.vmem [shape: f32[1,32], index: 6, kind: input, shape index: {}]
  %s7 = inlined_call_operand.vmem [shape: f32[1,32], index: 7, kind: input, shape index: {}]
  %s8 = inlined_call_operand.vmem [shape: f32[1,32], index: 8, kind: input, shape index: {}]
  %s9 = inlined_call_operand.vmem [shape: f32[1,32], index: 9, kind: input, shape index: {}]
  %s10 = inlined_call_operand.vmem [shape: f32[1,32], index: 10, kind: input, shape index: {}]
  %s11 = inlined_call_operand.vmem [shape: f32[32,384], index: 11, kind: input, shape index: {}]
  %s12 = inlined_call_operand.vmem [shape: f32[128,16], index: 12, kind: input, shape index: {}]
  %s13 = inlined_call_operand.vmem [shape: f32[16,16], index: 13, kind: input, shape index: {}]
  %s14 = inlined_call_operand.vmem [shape: f32[16,128], index: 14, kind: input, shape index: {}]
  %s15 = inlined_call_operand.vmem [shape: f32[128,32], index: 15, kind: input, shape index: {}]
  %s16 = inlined_call_operand.vmem [shape: f32[32,32], index: 16, kind: input, shape index: {}]
  %s17 = inlined_call_operand.vmem [shape: f32[32,96], index: 17, kind: input, shape index: {}]
  %s18 = inlined_call_operand.vmem [shape: f32[32,64], index: 18, kind: input, shape index: {}]
  %s19 = inlined_call_operand.vmem [shape: f32[32,32], index: 19, kind: input, shape index: {}]
  %s20 = inlined_call_operand.vmem [shape: f32[32,32], index: 20, kind: input, shape index: {}]
  %s21 = inlined_call_operand.vmem [shape: f32[1,32], index: 21, kind: input, shape index: {}]
  %s22 = inlined_call_operand.hbm [shape: f32[8,32], index: 22, kind: output, shape index: {}]
  %s23 = sld [smem:[#allocation0]]
  $region98: #{tpu_custom_call.1} parent=0
    _
  %s25 = ssub.s32 1, %s23
  %s26 = scalar_select 0, %s25, %s23
  $region1: #{tpu_custom_call.1} parent=0
    #allocation2 [shape = 'u8[4096]{0}', space=vmem, size = 0x1000, scoped, tag = 'output window, operand 0, single buffered']
    #allocation3 [shape = 's32[1]{0}', space=sflag, size = 0x4, scoped, tag = 'scoped memory for tpu_custom_call.1']
    %27 = vsyncpa [#allocation3], 0
    // Predicated region
    $region2: #{tpu_custom_call.1} parent=1 // pred_check
      _
    $region3: #{tpu_custom_call.1} parent=1 // pred_check_branch
      %29 = sbr.rel (0) target = $region5
    $region4: #{tpu_custom_call.1} parent=1 // pred_region
      _
    $region5: #{tpu_custom_call.1} parent=1 // pred_fallthru
      _
    // Predicated region
    $region6: #{tpu_custom_call.1} parent=1 // pred_check
      _
    $region7: #{tpu_custom_call.1} parent=1 // pred_check_branch
      %31 = sbr.rel (0) target = $region9
    $region8: #{tpu_custom_call.1} parent=1 // pred_region
      _
    $region9: #{tpu_custom_call.1} parent=1 // pred_fallthru
      _
    // Predicated region
    $region10: #{tpu_custom_call.1} parent=1 // pred_check
      _
    $region11: #{tpu_custom_call.1} parent=1 // pred_check_branch
      %33 = sbr.rel (0) target = $region13
    $region12: #{tpu_custom_call.1} parent=1 // pred_region
      _
    $region13: #{tpu_custom_call.1} parent=1 // pred_fallthru
      _
    // Predicated region
    $region14: #{tpu_custom_call.1} parent=1 // pred_check
      _
    $region15: #{tpu_custom_call.1} parent=1 // pred_check_branch
      %35 = sbr.rel (0) target = $region17
    $region16: #{tpu_custom_call.1} parent=1 // pred_region
      _
    $region17: #{tpu_custom_call.1} parent=1 // pred_fallthru
      _
    // Predicated region
    $region18: #{tpu_custom_call.1} parent=1 // pred_check
      _
    $region19: #{tpu_custom_call.1} parent=1 // pred_check_branch
      %37 = sbr.rel (0) target = $region21
    $region20: #{tpu_custom_call.1} parent=1 // pred_region
      _
    $region21: #{tpu_custom_call.1} parent=1 // pred_fallthru
      _
    // Predicated region
    $region22: #{tpu_custom_call.1} parent=1 // pred_check
      _
    $region23: #{tpu_custom_call.1} parent=1 // pred_check_branch
      %39 = sbr.rel (0) target = $region25
    $region24: #{tpu_custom_call.1} parent=1 // pred_region
      _
    $region25: #{tpu_custom_call.1} parent=1 // pred_fallthru
      _
    // Predicated region
    $region26: #{tpu_custom_call.1} parent=1 // pred_check
      _
    $region27: #{tpu_custom_call.1} parent=1 // pred_check_branch
      %41 = sbr.rel (0) target = $region29
    $region28: #{tpu_custom_call.1} parent=1 // pred_region
      _
    $region29: #{tpu_custom_call.1} parent=1 // pred_fallthru
      _
    // Predicated region
    $region30: #{tpu_custom_call.1} parent=1 // pred_check
      _
    $region31: #{tpu_custom_call.1} parent=1 // pred_check_branch
      %43 = sbr.rel (0) target = $region33
    $region32: #{tpu_custom_call.1} parent=1 // pred_region
      _
    $region33: #{tpu_custom_call.1} parent=1 // pred_fallthru
      _
    // Predicated region
    $region34: #{tpu_custom_call.1} parent=1 // pred_check
      _
    $region35: #{tpu_custom_call.1} parent=1 // pred_check_branch
      %45 = sbr.rel (0) target = $region37
    $region36: #{tpu_custom_call.1} parent=1 // pred_region
      _
    $region37: #{tpu_custom_call.1} parent=1 // pred_fallthru
      _
    // Predicated region
    $region38: #{tpu_custom_call.1} parent=1 // pred_check
      _
    $region39: #{tpu_custom_call.1} parent=1 // pred_check_branch
      %47 = sbr.rel (0) target = $region41
    $region40: #{tpu_custom_call.1} parent=1 // pred_region
      _
    $region41: #{tpu_custom_call.1} parent=1 // pred_fallthru
      _
    // Predicated region
    $region42: #{tpu_custom_call.1} parent=1 // pred_check
      _
    $region43: #{tpu_custom_call.1} parent=1 // pred_check_branch
      %49 = sbr.rel (0) target = $region45
    $region44: #{tpu_custom_call.1} parent=1 // pred_region
      _
    $region45: #{tpu_custom_call.1} parent=1 // pred_fallthru
      _
    // Predicated region
    $region46: #{tpu_custom_call.1} parent=1 // pred_check
      _
    $region47: #{tpu_custom_call.1} parent=1 // pred_check_branch
      %51 = sbr.rel (0) target = $region49
    $region48: #{tpu_custom_call.1} parent=1 // pred_region
      _
    $region49: #{tpu_custom_call.1} parent=1 // pred_fallthru
      _
    // Predicated region
    $region50: #{tpu_custom_call.1} parent=1 // pred_check
      _
    $region51: #{tpu_custom_call.1} parent=1 // pred_check_branch
      %53 = sbr.rel (0) target = $region53
    $region52: #{tpu_custom_call.1} parent=1 // pred_region
      _
    $region53: #{tpu_custom_call.1} parent=1 // pred_fallthru
      _
    // Predicated region
    $region54: #{tpu_custom_call.1} parent=1 // pred_check
      _
    $region55: #{tpu_custom_call.1} parent=1 // pred_check_branch
      %55 = sbr.rel (0) target = $region57
    $region56: #{tpu_custom_call.1} parent=1 // pred_region
      _
    $region57: #{tpu_custom_call.1} parent=1 // pred_fallthru
      _
    // Predicated region
    $region58: #{tpu_custom_call.1} parent=1 // pred_check
      _
    $region59: #{tpu_custom_call.1} parent=1 // pred_check_branch
      %57 = sbr.rel (0) target = $region61
    $region60: #{tpu_custom_call.1} parent=1 // pred_region
      _
    $region61: #{tpu_custom_call.1} parent=1 // pred_fallthru
      _
    // Predicated region
    $region62: #{tpu_custom_call.1} parent=1 // pred_check
      _
    $region63: #{tpu_custom_call.1} parent=1 // pred_check_branch
      %59 = sbr.rel (0) target = $region65
    $region64: #{tpu_custom_call.1} parent=1 // pred_region
      _
    $region65: #{tpu_custom_call.1} parent=1 // pred_fallthru
      _
    // Predicated region
    $region66: #{tpu_custom_call.1} parent=1 // pred_check
      _
    $region67: #{tpu_custom_call.1} parent=1 // pred_check_branch
      %61 = sbr.rel (0) target = $region69
    $region68: #{tpu_custom_call.1} parent=1 // pred_region
      _
    $region69: #{tpu_custom_call.1} parent=1 // pred_fallthru
      _
    // Predicated region
    $region70: #{tpu_custom_call.1} parent=1 // pred_check
      _
    $region71: #{tpu_custom_call.1} parent=1 // pred_check_branch
      %63 = sbr.rel (0) target = $region73
    $region72: #{tpu_custom_call.1} parent=1 // pred_region
      _
    $region73: #{tpu_custom_call.1} parent=1 // pred_fallthru
      _
    // Predicated region
    $region74: #{tpu_custom_call.1} parent=1 // pred_check
      _
    $region75: #{tpu_custom_call.1} parent=1 // pred_check_branch
      %65 = sbr.rel (0) target = $region77
    $region76: #{tpu_custom_call.1} parent=1 // pred_region
      _
    $region77: #{tpu_custom_call.1} parent=1 // pred_fallthru
      _
    // Predicated region
    $region78: #{tpu_custom_call.1} parent=1 // pred_check
      _
    $region79: #{tpu_custom_call.1} parent=1 // pred_check_branch
      %67 = sbr.rel (0) target = $region81
    $region80: #{tpu_custom_call.1} parent=1 // pred_region
      _
    $region81: #{tpu_custom_call.1} parent=1 // pred_fallthru
      _
    // Predicated region
    $region82: #{tpu_custom_call.1} parent=1 // pred_check
      _
    $region83: #{tpu_custom_call.1} parent=1 // pred_check_branch
      %69 = sbr.rel (0) target = $region85
    $region84: #{tpu_custom_call.1} parent=1 // pred_region
      _
    $region85: #{tpu_custom_call.1} parent=1 // pred_fallthru
      _
    // Predicated region
    $region86: #{tpu_custom_call.1} parent=1 // pred_check
      _
    $region87: #{tpu_custom_call.1} parent=1 // pred_check_branch
      %71 = sbr.rel (0) target = $region89
    $region88: #{tpu_custom_call.1} parent=1 // pred_region
      _
    $region89: #{tpu_custom_call.1} parent=1 // pred_fallthru
      _
    %v72 = vld [vmem:[%s0] sm:$0xff]
    %v73 = vld [vmem:[%s1] sm:$0xff]
    %v74 = vld [vmem:[%s1 + $0x8] sm:$0xff]
    %v75 = vld [vmem:[%s1 + $0x10] sm:$0xff]
    %v76 = vld [vmem:[%s1 + $0x18] sm:$0xff]
    %v77 = vld [vmem:[%s1 + $0x20] sm:$0xff]
    %v78 = vld [vmem:[%s1 + $0x28] sm:$0xff]
    %v79 = vld [vmem:[%s1 + $0x30] sm:$0xff]
    %v80 = vld [vmem:[%s1 + $0x38] sm:$0xff]
    %v81 = vld [vmem:[%s1 + $0x40] sm:$0xff]
    %v82 = vld [vmem:[%s1 + $0x48] sm:$0xff]
    %v83 = vld [vmem:[%s1 + $0x50] sm:$0xff]
    %v84 = vld [vmem:[%s1 + $0x58] sm:$0xff]
    %v85 = vld [vmem:[%s1 + $0x60] sm:$0xff]
    %v86 = vld [vmem:[%s1 + $0x68] sm:$0xff]
    %v87 = vld [vmem:[%s1 + $0x70] sm:$0xff]
    %v88 = vld [vmem:[%s1 + $0x78] sm:$0xff]
    %v89 = vld [vmem:[%s2] sm:$0xf]
    %v91 = vperm.slane %v89, 0
    %v92 = vperm.slane %v89, 1
    %v93 = vperm.slane %v89, 2
    %v94 = vperm.slane %v89, 3
    %vm99 = vcmask 261120
    %v101 = vsel %vm99, %v72, 0
    %103 = vmatpush.msra.mxu0 0.0
    %104 = vmatpush.msra.mxu0 0.0
    %105 = vmatpush.msra.mxu0 0.0
    %106 = vmatpush.msra.mxu0 0.0
    %107 = vmatpush.msra.mxu0 0.0
    %108 = vmatpush.msra.mxu0 0.0
    %109 = vmatpush.msra.mxu0 0.0
    %110 = vmatpush.msra.mxu0 0.0
    %111 = vmatpush.msra.mxu0 0.0
    %112 = vmatpush.msra.mxu0 0.0
    %113 = vmatpush.msra.mxu0 0.0
    %114 = vmatpush.msra.mxu0 0.0
    %115 = vmatpush.msra.mxu0 %v85
    %116 = vmatpush.msra.mxu0 %v81
    %117 = vmatpush.msra.mxu0 %v77
    %118 = vmatpush.msra.mxu0 %v73
    %119 = vmatmul.f32.gmra.mxu0 %v101
    %v120 = vpop.f32.mrf.mxu0
    %v121 = vadd.f32 %v91, %v120
    %122 = vdwg.mxu0
    %123 = vmatpush.msra.mxu0 0.0
    %124 = vmatpush.msra.mxu0 0.0
    %125 = vmatpush.msra.mxu0 0.0
    %126 = vmatpush.msra.mxu0 0.0
    %127 = vmatpush.msra.mxu0 0.0
    %128 = vmatpush.msra.mxu0 0.0
    %129 = vmatpush.msra.mxu0 0.0
    %130 = vmatpush.msra.mxu0 0.0
    %131 = vmatpush.msra.mxu0 0.0
    %132 = vmatpush.msra.mxu0 0.0
    %133 = vmatpush.msra.mxu0 0.0
    %134 = vmatpush.msra.mxu0 0.0
    %135 = vmatpush.msra.mxu0 %v86
    %136 = vmatpush.msra.mxu0 %v82
    %137 = vmatpush.msra.mxu0 %v78
    %138 = vmatpush.msra.mxu0 %v74
    %139 = vmatmul.f32.gmra.mxu0 %v101
    %v140 = vpop.f32.mrf.mxu0
    %v141 = vadd.f32 %v92, %v140
    %142 = vdwg.mxu0
    %143 = vmatpush.msra.mxu0 0.0
    %144 = vmatpush.msra.mxu0 0.0
    %145 = vmatpush.msra.mxu0 0.0
    %146 = vmatpush.msra.mxu0 0.0
    %147 = vmatpush.msra.mxu0 0.0
    %148 = vmatpush.msra.mxu0 0.0
    %149 = vmatpush.msra.mxu0 0.0
    %150 = vmatpush.msra.mxu0 0.0
    %151 = vmatpush.msra.mxu0 0.0
    %152 = vmatpush.msra.mxu0 0.0
    %153 = vmatpush.msra.mxu0 0.0
    %154 = vmatpush.msra.mxu0 0.0
    %155 = vmatpush.msra.mxu0 %v87
    %156 = vmatpush.msra.mxu0 %v83
    %157 = vmatpush.msra.mxu0 %v79
    %158 = vmatpush.msra.mxu0 %v75
    %159 = vmatmul.f32.gmra.mxu0 %v101
    %v160 = vpop.f32.mrf.mxu0
    %v161 = vadd.f32 %v93, %v160
    %162 = vdwg.mxu0
    %163 = vmatpush.msra.mxu0 0.0
    %164 = vmatpush.msra.mxu0 0.0
    %165 = vmatpush.msra.mxu0 0.0
    %166 = vmatpush.msra.mxu0 0.0
    %167 = vmatpush.msra.mxu0 0.0
    %168 = vmatpush.msra.mxu0 0.0
    %169 = vmatpush.msra.mxu0 0.0
    %170 = vmatpush.msra.mxu0 0.0
    %171 = vmatpush.msra.mxu0 0.0
    %172 = vmatpush.msra.mxu0 0.0
    %173 = vmatpush.msra.mxu0 0.0
    %174 = vmatpush.msra.mxu0 0.0
    %175 = vmatpush.msra.mxu0 %v88
    %176 = vmatpush.msra.mxu0 %v84
    %177 = vmatpush.msra.mxu0 %v80
    %178 = vmatpush.msra.mxu0 %v76
    %179 = vmatmul.f32.gmra.mxu0 %v101
    %v180 = vpop.f32.mrf.mxu0
    %v181 = vadd.f32 %v94, %v180
    %182 = vdwg.mxu0
    %v183 = vmax.f32 %v121, 0.0
    %v184 = vmax.f32 %v141, 0.0
    %v185 = vmax.f32 %v161, 0.0
    %v186 = vmax.f32 %v181, 0.0
    %v187 = vld [vmem:[%s3] sm:$0xff]
    %v188 = vld [vmem:[%s3 + $0x8] sm:$0xff]
    %v189 = vld [vmem:[%s3 + $0x10] sm:$0xff]
    %v190 = vld [vmem:[%s3 + $0x18] sm:$0xff]
    %v191 = vld [vmem:[%s3 + $0x20] sm:$0xff]
    %v192 = vld [vmem:[%s3 + $0x28] sm:$0xff]
    %v193 = vld [vmem:[%s3 + $0x30] sm:$0xff]
    %v194 = vld [vmem:[%s3 + $0x38] sm:$0xff]
    %v195 = vld [vmem:[%s3 + $0x40] sm:$0xff]
    %v196 = vld [vmem:[%s3 + $0x48] sm:$0xff]
    %v197 = vld [vmem:[%s3 + $0x50] sm:$0xff]
    %v198 = vld [vmem:[%s3 + $0x58] sm:$0xff]
    %v199 = vld [vmem:[%s3 + $0x60] sm:$0xff]
    %v200 = vld [vmem:[%s3 + $0x68] sm:$0xff]
    %v201 = vld [vmem:[%s3 + $0x70] sm:$0xff]
    %v202 = vld [vmem:[%s3 + $0x78] sm:$0xff]
    %v203 = vld [vmem:[%s3 + $0x80] sm:$0xff]
    %v204 = vld [vmem:[%s3 + $0x88] sm:$0xff]
    %v205 = vld [vmem:[%s3 + $0x90] sm:$0xff]
    %v206 = vld [vmem:[%s3 + $0x98] sm:$0xff]
    %v207 = vld [vmem:[%s3 + $0xa0] sm:$0xff]
    %v208 = vld [vmem:[%s3 + $0xa8] sm:$0xff]
    %v209 = vld [vmem:[%s3 + $0xb0] sm:$0xff]
    %v210 = vld [vmem:[%s3 + $0xb8] sm:$0xff]
    %v211 = vld [vmem:[%s3 + $0xc0] sm:$0xff]
    %v212 = vld [vmem:[%s3 + $0xc8] sm:$0xff]
    %v213 = vld [vmem:[%s3 + $0xd0] sm:$0xff]
    %v214 = vld [vmem:[%s3 + $0xd8] sm:$0xff]
    %v215 = vld [vmem:[%s3 + $0xe0] sm:$0xff]
    %v216 = vld [vmem:[%s3 + $0xe8] sm:$0xff]
    %v217 = vld [vmem:[%s3 + $0xf0] sm:$0xff]
    %v218 = vld [vmem:[%s3 + $0xf8] sm:$0xff]
    %v219 = vld [vmem:[%s3 + $0x100] sm:$0xff]
    %v220 = vld [vmem:[%s3 + $0x108] sm:$0xff]
    %v221 = vld [vmem:[%s3 + $0x110] sm:$0xff]
    %v222 = vld [vmem:[%s3 + $0x118] sm:$0xff]
    %v223 = vld [vmem:[%s3 + $0x120] sm:$0xff]
    %v224 = vld [vmem:[%s3 + $0x128] sm:$0xff]
    %v225 = vld [vmem:[%s3 + $0x130] sm:$0xff]
    %v226 = vld [vmem:[%s3 + $0x138] sm:$0xff]
    %v227 = vld [vmem:[%s3 + $0x140] sm:$0xff]
    %v228 = vld [vmem:[%s3 + $0x148] sm:$0xff]
    %v229 = vld [vmem:[%s3 + $0x150] sm:$0xff]
    %v230 = vld [vmem:[%s3 + $0x158] sm:$0xff]
    %v231 = vld [vmem:[%s3 + $0x160] sm:$0xff]
    %v232 = vld [vmem:[%s3 + $0x168] sm:$0xff]
    %v233 = vld [vmem:[%s3 + $0x170] sm:$0xff]
    %v234 = vld [vmem:[%s3 + $0x178] sm:$0xff]
    %v235 = vld [vmem:[%s3 + $0x180] sm:$0xff]
    %v236 = vld [vmem:[%s3 + $0x188] sm:$0xff]
    %v237 = vld [vmem:[%s3 + $0x190] sm:$0xff]
    %v238 = vld [vmem:[%s3 + $0x198] sm:$0xff]
    %v239 = vld [vmem:[%s3 + $0x1a0] sm:$0xff]
    %v240 = vld [vmem:[%s3 + $0x1a8] sm:$0xff]
    %v241 = vld [vmem:[%s3 + $0x1b0] sm:$0xff]
    %v242 = vld [vmem:[%s3 + $0x1b8] sm:$0xff]
    %v243 = vld [vmem:[%s3 + $0x1c0] sm:$0xff]
    %v244 = vld [vmem:[%s3 + $0x1c8] sm:$0xff]
    %v245 = vld [vmem:[%s3 + $0x1d0] sm:$0xff]
    %v246 = vld [vmem:[%s3 + $0x1d8] sm:$0xff]
    %v247 = vld [vmem:[%s3 + $0x1e0] sm:$0xff]
    %v248 = vld [vmem:[%s3 + $0x1e8] sm:$0xff]
    %v249 = vld [vmem:[%s3 + $0x1f0] sm:$0xff]
    %v250 = vld [vmem:[%s3 + $0x1f8] sm:$0xff]
    %v251 = vld [vmem:[%s4] sm:$0x1]
    %v253 = vperm.slane %v251, 0
    %255 = vmatpush.msra.mxu0 %v202
    %256 = vmatpush.msra.mxu0 %v201
    %257 = vmatpush.msra.mxu0 %v200
    %258 = vmatpush.msra.mxu0 %v199
    %259 = vmatpush.msra.mxu0 %v198
    %260 = vmatpush.msra.mxu0 %v197
    %261 = vmatpush.msra.mxu0 %v196
    %262 = vmatpush.msra.mxu0 %v195
    %263 = vmatpush.msra.mxu0 %v194
    %264 = vmatpush.msra.mxu0 %v193
    %265 = vmatpush.msra.mxu0 %v192
    %266 = vmatpush.msra.mxu0 %v191
    %267 = vmatpush.msra.mxu0 %v190
    %268 = vmatpush.msra.mxu0 %v189
    %269 = vmatpush.msra.mxu0 %v188
    %270 = vmatpush.msra.mxu0 %v187
    %271 = vmatmul.f32.gmra.mxu0 %v183
    %v272 = vpop.f32.mrf.mxu0
    %v273 = vadd.f32 %v253, %v272
    %274 = vdwg.mxu0
    %275 = vmatpush.msra.mxu0 %v218
    %276 = vmatpush.msra.mxu0 %v217
    %277 = vmatpush.msra.mxu0 %v216
    %278 = vmatpush.msra.mxu0 %v215
    %279 = vmatpush.msra.mxu0 %v214
    %280 = vmatpush.msra.mxu0 %v213
    %281 = vmatpush.msra.mxu0 %v212
    %282 = vmatpush.msra.mxu0 %v211
    %283 = vmatpush.msra.mxu0 %v210
    %284 = vmatpush.msra.mxu0 %v209
    %285 = vmatpush.msra.mxu0 %v208
    %286 = vmatpush.msra.mxu0 %v207
    %287 = vmatpush.msra.mxu0 %v206
    %288 = vmatpush.msra.mxu0 %v205
    %289 = vmatpush.msra.mxu0 %v204
    %290 = vmatpush.msra.mxu0 %v203
    %291 = vmatmul.f32.gmra.mxu0 %v184
    %v292 = vpop.f32.mrf.mxu0
    %v293 = vadd.f32 %v273, %v292
    %294 = vdwg.mxu0
    %295 = vmatpush.msra.mxu0 %v234
    %296 = vmatpush.msra.mxu0 %v233
    %297 = vmatpush.msra.mxu0 %v232
    %298 = vmatpush.msra.mxu0 %v231
    %299 = vmatpush.msra.mxu0 %v230
    %300 = vmatpush.msra.mxu0 %v229
    %301 = vmatpush.msra.mxu0 %v228
    %302 = vmatpush.msra.mxu0 %v227
    %303 = vmatpush.msra.mxu0 %v226
    %304 = vmatpush.msra.mxu0 %v225
    %305 = vmatpush.msra.mxu0 %v224
    %306 = vmatpush.msra.mxu0 %v223
    %307 = vmatpush.msra.mxu0 %v222
    %308 = vmatpush.msra.mxu0 %v221
    %309 = vmatpush.msra.mxu0 %v220
    %310 = vmatpush.msra.mxu0 %v219
    %311 = vmatmul.f32.gmra.mxu0 %v185
    %v312 = vpop.f32.mrf.mxu0
    %v313 = vadd.f32 %v293, %v312
    %314 = vdwg.mxu0
    %315 = vmatpush.msra.mxu0 %v250
    %316 = vmatpush.msra.mxu0 %v249
    %317 = vmatpush.msra.mxu0 %v248
    %318 = vmatpush.msra.mxu0 %v247
    %319 = vmatpush.msra.mxu0 %v246
    %320 = vmatpush.msra.mxu0 %v245
    %321 = vmatpush.msra.mxu0 %v244
    %322 = vmatpush.msra.mxu0 %v243
    %323 = vmatpush.msra.mxu0 %v242
    %324 = vmatpush.msra.mxu0 %v241
    %325 = vmatpush.msra.mxu0 %v240
    %326 = vmatpush.msra.mxu0 %v239
    %327 = vmatpush.msra.mxu0 %v238
    %328 = vmatpush.msra.mxu0 %v237
    %329 = vmatpush.msra.mxu0 %v236
    %330 = vmatpush.msra.mxu0 %v235
    %331 = vmatmul.f32.gmra.mxu0 %v186
    %v332 = vpop.f32.mrf.mxu0
    %v333 = vadd.f32 %v313, %v332
    %334 = vdwg.mxu0
    %v335 = vxor.u32 %v72, 2147483648
    %v336 = vmul.f32 %v335, 1.442695
    %v337 = vpow.pop %v336
    %v338 = vadd.f32 %v337, 1.0
    %v339 = vrcp.pop %v338
    %v340 = vmul.f32 %v338, %v339
    %v341 = vsub.f32 1.0, %v340
    %v342 = vmul.f32 %v339, %v341
    %v343 = vadd.f32 %v339, %v342
    %vm344 = vweird.f32 %v338
    %vm345 = vweird.f32 %v339
    %vm346 = vmor %vm344, %vm345
    %v347 = vsel %vm346, %v339, %v343
    %v348 = vand.u32 2147483647, %v338
    %vm349 = vcmp.eq.f32.partialorder %v348, 8.507059e+37
    %v350 = vand.u32 %v338, 2147483648
    %v351 = vor.u32 1.1754944e-38, %v350
    %v352 = vsel %vm349, %v351, %v347
    %v353 = vmul.f32 1.0, %v352
    %v354 = vmul.f32 %v333, %v353
    %v355 = vld [vmem:[%s5] sm:$0xff]
    %v356 = vld [vmem:[%s5 + $0x8] sm:$0xff]
    %v357 = vld [vmem:[%s5 + $0x10] sm:$0xff]
    %v358 = vld [vmem:[%s5 + $0x18] sm:$0xff]
    %v359 = vld [vmem:[%s6] sm:$0x1]
    %v361 = vperm.slane %v359, 0
    %v364 = vsel %vm99, %v354, 0
    %366 = vmatpush.msra.mxu0 0.0
    %367 = vmatpush.msra.mxu0 0.0
    %368 = vmatpush.msra.mxu0 0.0
    %369 = vmatpush.msra.mxu0 0.0
    %370 = vmatpush.msra.mxu0 0.0
    %371 = vmatpush.msra.mxu0 0.0
    %372 = vmatpush.msra.mxu0 0.0
    %373 = vmatpush.msra.mxu0 0.0
    %374 = vmatpush.msra.mxu0 0.0
    %375 = vmatpush.msra.mxu0 0.0
    %376 = vmatpush.msra.mxu0 0.0
    %377 = vmatpush.msra.mxu0 0.0
    %378 = vmatpush.msra.mxu0 %v358
    %379 = vmatpush.msra.mxu0 %v357
    %380 = vmatpush.msra.mxu0 %v356
    %381 = vmatpush.msra.mxu0 %v355
    %382 = vmatmul.f32.gmra.mxu0 %v364
    %v383 = vpop.f32.mrf.mxu0
    %v384 = vadd.f32 %v361, %v383
    %385 = vdwg.mxu0
    %v386 = vxor.u32 %v354, 2147483648
    %v387 = vmul.f32 %v386, 1.442695
    %v388 = vpow.pop %v387
    %v389 = vadd.f32 %v388, 1.0
    %v390 = vrcp.pop %v389
    %v391 = vmul.f32 %v389, %v390
    %v392 = vsub.f32 1.0, %v391
    %v393 = vmul.f32 %v390, %v392
    %v394 = vadd.f32 %v390, %v393
    %vm395 = vweird.f32 %v389
    %vm396 = vweird.f32 %v390
    %vm397 = vmor %vm395, %vm396
    %v398 = vsel %vm397, %v390, %v394
    %v399 = vand.u32 2147483647, %v389
    %vm400 = vcmp.eq.f32.partialorder %v399, 8.507059e+37
    %v401 = vand.u32 %v389, 2147483648
    %v402 = vor.u32 1.1754944e-38, %v401
    %v403 = vsel %vm400, %v402, %v398
    %v404 = vmul.f32 1.0, %v403
    %v405 = vmul.f32 %v384, %v404
    %v406 = vld [vmem:[%s7] sm:$0x1]
    %v408 = vperm.slane %v406, 0
    %v410 = vmul.f32 %v405, %v408
    %v411 = vld [vmem:[%s8] sm:$0x1]
    %v413 = vperm.slane %v411, 0
    %v415 = vadd.f32 %v410, %v413
    %v416 = vsel %vm99, %v415, 0.0
    %v417 = vrot.slane %v416, 4
    %v418 = vadd.f32 %v416, %v417
    %v419 = vrot.slane %v418, 2
    %v420 = vadd.f32 %v418, %v419
    %v421 = vrot.slane %v420, 1
    %v422 = vadd.f32 %v420, %v421
    %v423 = vrcp.pop 8.0
    %v424 = vmul.f32 8.0, %v423
    %v425 = vsub.f32 1.0, %v424
    %v426 = vmul.f32 %v423, %v425
    %v427 = vadd.f32 %v423, %v426
    %vm428 = vweird.f32 %v423
    %v429 = vsel %vm428, %v423, %v427
    %v430 = vmul.f32 %v422, %v429
    %v431 = vsub.f32 %v415, %v430
    %v432 = vmul.f32 %v431, %v431
    %v433 = vsel %vm99, %v432, 0.0
    %v434 = vrot.slane %v433, 4
    %v435 = vadd.f32 %v433, %v434
    %v436 = vrot.slane %v435, 2
    %v437 = vadd.f32 %v435, %v436
    %v438 = vrot.slane %v437, 1
    %v439 = vadd.f32 %v437, %v438
    %v440 = vmul.f32 %v439, %v429
    %v441 = vld [vmem:[%s9] sm:$0x1]
    %v443 = vperm.slane %v441, 0
    %v445 = vmul.f32 %v443, %v431
    %v446 = vadd.f32 %v440, 1e-05
    %v447 = vrsqrt.pop %v446
    %v448 = vmul.f32 %v447, %v446
    %v449 = vmul.f32 %v448, %v447
    %v450 = vmul.f32 0.5, %v449
    %v451 = vsub.f32 1.5, %v450
    %v452 = vmul.f32 %v447, %v451
    %vm453 = vweird.f32 %v446
    %vm454 = vweird.f32 %v447
    %vm455 = vmor %vm453, %vm454
    %v456 = vsel %vm455, %v447, %v452
    %v457 = vmul.f32 %v445, %v456
    %v458 = vld [vmem:[%s10] sm:$0x1]
    %v460 = vperm.slane %v458, 0
    %v462 = vadd.f32 %v457, %v460
    %v463 = vmax.f32 %v462, 0.0
    %v465 = vsel %vm99, %v463, 0
    %467 = vmatpush.msra.mxu0 0.0
    %468 = vmatpush.msra.mxu0 0.0
    %469 = vmatpush.msra.mxu0 0.0
    %470 = vmatpush.msra.mxu0 0.0
    %471 = vmatpush.msra.mxu0 0.0
    %472 = vmatpush.msra.mxu0 0.0
    %473 = vmatpush.msra.mxu0 0.0
    %474 = vmatpush.msra.mxu0 0.0
    %475 = vmatpush.msra.mxu0 0.0
    %476 = vmatpush.msra.mxu0 0.0
    %477 = vmatpush.msra.mxu0 0.0
    %478 = vmatpush.msra.mxu0 0.0
    %479 = vmatpush.msra.mxu0 %v358
    %480 = vmatpush.msra.mxu0 %v357
    %481 = vmatpush.msra.mxu0 %v356
    %482 = vmatpush.msra.mxu0 %v355
    %483 = vmatmul.f32.gmra.mxu0 %v465
    %v484 = vpop.f32.mrf.mxu0
    %v485 = vadd.f32 %v361, %v484
    %486 = vdwg.mxu0
    %v487 = vadd.f32 %v354, %v485
    %v488 = vld [vmem:[%s11] sm:$0xff]
    %v489 = vld [vmem:[%s11 + $0x8] sm:$0xff]
    %v490 = vld [vmem:[%s11 + $0x10] sm:$0xff]
    %v491 = vld [vmem:[%s11 + $0x18] sm:$0xff]
    %v492 = vld [vmem:[%s11 + $0x20] sm:$0xff]
    %v493 = vld [vmem:[%s11 + $0x28] sm:$0xff]
    %v494 = vld [vmem:[%s11 + $0x30] sm:$0xff]
    %v495 = vld [vmem:[%s11 + $0x38] sm:$0xff]
    %v496 = vld [vmem:[%s11 + $0x40] sm:$0xff]
    %v497 = vld [vmem:[%s11 + $0x48] sm:$0xff]
    %v498 = vld [vmem:[%s11 + $0x50] sm:$0xff]
    %v499 = vld [vmem:[%s11 + $0x58] sm:$0xff]
    %v501 = vsel %vm99, %v487, 0
    %503 = vmatpush.msra.mxu0 0.0
    %504 = vmatpush.msra.mxu0 0.0
    %505 = vmatpush.msra.mxu0 0.0
    %506 = vmatpush.msra.mxu0 0.0
    %507 = vmatpush.msra.mxu0 0.0
    %508 = vmatpush.msra.mxu0 0.0
    %509 = vmatpush.msra.mxu0 0.0
    %510 = vmatpush.msra.mxu0 0.0
    %511 = vmatpush.msra.mxu0 0.0
    %512 = vmatpush.msra.mxu0 0.0
    %513 = vmatpush.msra.mxu0 0.0
    %514 = vmatpush.msra.mxu0 0.0
    %515 = vmatpush.msra.mxu0 %v497
    %516 = vmatpush.msra.mxu0 %v494
    %517 = vmatpush.msra.mxu0 %v491
    %518 = vmatpush.msra.mxu0 %v488
    %519 = vmatmul.f32.gmra.mxu0 %v501
    %v520 = vpop.f32.mrf.mxu0
    %v521 = vadd.f32 0.0, %v520
    %522 = vdwg.mxu0
    %523 = vmatpush.msra.mxu0 0.0
    %524 = vmatpush.msra.mxu0 0.0
    %525 = vmatpush.msra.mxu0 0.0
    %526 = vmatpush.msra.mxu0 0.0
    %527 = vmatpush.msra.mxu0 0.0
    %528 = vmatpush.msra.mxu0 0.0
    %529 = vmatpush.msra.mxu0 0.0
    %530 = vmatpush.msra.mxu0 0.0
    %531 = vmatpush.msra.mxu0 0.0
    %532 = vmatpush.msra.mxu0 0.0
    %533 = vmatpush.msra.mxu0 0.0
    %534 = vmatpush.msra.mxu0 0.0
    %535 = vmatpush.msra.mxu0 %v498
    %536 = vmatpush.msra.mxu0 %v495
    %537 = vmatpush.msra.mxu0 %v492
    %538 = vmatpush.msra.mxu0 %v489
    %539 = vmatmul.f32.gmra.mxu0 %v501
    %v540 = vpop.f32.mrf.mxu0
    %v541 = vadd.f32 0.0, %v540
    %542 = vdwg.mxu0
    %543 = vmatpush.msra.mxu0 0.0
    %544 = vmatpush.msra.mxu0 0.0
    %545 = vmatpush.msra.mxu0 0.0
    %546 = vmatpush.msra.mxu0 0.0
    %547 = vmatpush.msra.mxu0 0.0
    %548 = vmatpush.msra.mxu0 0.0
    %549 = vmatpush.msra.mxu0 0.0
    %550 = vmatpush.msra.mxu0 0.0
    %551 = vmatpush.msra.mxu0 0.0
    %552 = vmatpush.msra.mxu0 0.0
    %553 = vmatpush.msra.mxu0 0.0
    %554 = vmatpush.msra.mxu0 0.0
    %555 = vmatpush.msra.mxu0 %v499
    %556 = vmatpush.msra.mxu0 %v496
    %557 = vmatpush.msra.mxu0 %v493
    %558 = vmatpush.msra.mxu0 %v490
    %559 = vmatmul.f32.gmra.mxu0 %v501
    %v560 = vpop.f32.mrf.mxu0
    %v561 = vadd.f32 0.0, %v560
    %562 = vdwg.mxu0
    %v563 = vmul.f32 %v521, %v541
    %v564 = vld [vmem:[%s12] sm:$0xff]
    %v565 = vld [vmem:[%s12 + $0x8] sm:$0xff]
    %v566 = vld [vmem:[%s12 + $0x10] sm:$0xff]
    %v567 = vld [vmem:[%s12 + $0x18] sm:$0xff]
    %v568 = vld [vmem:[%s12 + $0x20] sm:$0xff]
    %v569 = vld [vmem:[%s12 + $0x28] sm:$0xff]
    %v570 = vld [vmem:[%s12 + $0x30] sm:$0xff]
    %v571 = vld [vmem:[%s12 + $0x38] sm:$0xff]
    %v572 = vld [vmem:[%s12 + $0x40] sm:$0xff]
    %v573 = vld [vmem:[%s12 + $0x48] sm:$0xff]
    %v574 = vld [vmem:[%s12 + $0x50] sm:$0xff]
    %v575 = vld [vmem:[%s12 + $0x58] sm:$0xff]
    %v576 = vld [vmem:[%s12 + $0x60] sm:$0xff]
    %v577 = vld [vmem:[%s12 + $0x68] sm:$0xff]
    %v578 = vld [vmem:[%s12 + $0x70] sm:$0xff]
    %v579 = vld [vmem:[%s12 + $0x78] sm:$0xff]
    %580 = vmatpush.msra.mxu0 %v579
    %581 = vmatpush.msra.mxu0 %v578
    %582 = vmatpush.msra.mxu0 %v577
    %583 = vmatpush.msra.mxu0 %v576
    %584 = vmatpush.msra.mxu0 %v575
    %585 = vmatpush.msra.mxu0 %v574
    %586 = vmatpush.msra.mxu0 %v573
    %587 = vmatpush.msra.mxu0 %v572
    %588 = vmatpush.msra.mxu0 %v571
    %589 = vmatpush.msra.mxu0 %v570
    %590 = vmatpush.msra.mxu0 %v569
    %591 = vmatpush.msra.mxu0 %v568
    %592 = vmatpush.msra.mxu0 %v567
    %593 = vmatpush.msra.mxu0 %v566
    %594 = vmatpush.msra.mxu0 %v565
    %595 = vmatpush.msra.mxu0 %v564
    %596 = vmatmul.f32.gmra.mxu0 %v563
    %v597 = vpop.f32.mrf.mxu0
    %v598 = vadd.f32 0.0, %v597
    %599 = vdwg.mxu0
    %vm600 = vcmask 130048
    %v601 = vsel %vm600, %v598, -inf
    %602 = vmax.xlane.f32.xlu0 %v601
    %v603 = vpop.xlane.xlu0 %602
    %v604 = vsub.f32 %v598, %v603
    %v605 = vmul.f32 %v604, 1.442695
    %v606 = vpow.pop %v605
    %v607 = vld [vmem:[%s13] sm:$0xff]
    %v608 = vld [vmem:[%s13 + $0x8] sm:$0xff]
    %v610 = vsel %vm600, %v606, 0
    %612 = vmatpush.msra.mxu0 0.0
    %613 = vmatpush.msra.mxu0 0.0
    %614 = vmatpush.msra.mxu0 0.0
    %615 = vmatpush.msra.mxu0 0.0
    %616 = vmatpush.msra.mxu0 0.0
    %617 = vmatpush.msra.mxu0 0.0
    %618 = vmatpush.msra.mxu0 0.0
    %619 = vmatpush.msra.mxu0 0.0
    %620 = vmatpush.msra.mxu0 0.0
    %621 = vmatpush.msra.mxu0 0.0
    %622 = vmatpush.msra.mxu0 0.0
    %623 = vmatpush.msra.mxu0 0.0
    %624 = vmatpush.msra.mxu0 0.0
    %625 = vmatpush.msra.mxu0 0.0
    %626 = vmatpush.msra.mxu0 %v608
    %627 = vmatpush.msra.mxu0 %v607
    %628 = vmatmul.f32.gmra.mxu0 %v610
    %v629 = vpop.f32.mrf.mxu0
    %v630 = vadd.f32 0.0, %v629
    %631 = vdwg.mxu0
    %v632 = vrcp.pop %v630
    %v633 = vmul.f32 %v606, %v632
    %v634 = vld [vmem:[%s14] sm:$0xff]
    %v635 = vld [vmem:[%s14 + $0x8] sm:$0xff]
    %v637 = vsel %vm600, %v633, 0
    %639 = vmatpush.msra.mxu0 0.0
    %640 = vmatpush.msra.mxu0 0.0
    %641 = vmatpush.msra.mxu0 0.0
    %642 = vmatpush.msra.mxu0 0.0
    %643 = vmatpush.msra.mxu0 0.0
    %644 = vmatpush.msra.mxu0 0.0
    %645 = vmatpush.msra.mxu0 0.0
    %646 = vmatpush.msra.mxu0 0.0
    %647 = vmatpush.msra.mxu0 0.0
    %648 = vmatpush.msra.mxu0 0.0
    %649 = vmatpush.msra.mxu0 0.0
    %650 = vmatpush.msra.mxu0 0.0
    %651 = vmatpush.msra.mxu0 0.0
    %652 = vmatpush.msra.mxu0 0.0
    %653 = vmatpush.msra.mxu0 %v635
    %654 = vmatpush.msra.mxu0 %v634
    %655 = vmatmul.f32.gmra.mxu0 %v637
    %v656 = vpop.f32.mrf.mxu0
    %v657 = vadd.f32 0.0, %v656
    %658 = vdwg.mxu0
    %v659 = vmul.f32 %v657, %v561
    %v660 = vld [vmem:[%s15] sm:$0xff]
    %v661 = vld [vmem:[%s15 + $0x8] sm:$0xff]
    %v662 = vld [vmem:[%s15 + $0x10] sm:$0xff]
    %v663 = vld [vmem:[%s15 + $0x18] sm:$0xff]
    %v664 = vld [vmem:[%s15 + $0x20] sm:$0xff]
    %v665 = vld [vmem:[%s15 + $0x28] sm:$0xff]
    %v666 = vld [vmem:[%s15 + $0x30] sm:$0xff]
    %v667 = vld [vmem:[%s15 + $0x38] sm:$0xff]
    %v668 = vld [vmem:[%s15 + $0x40] sm:$0xff]
    %v669 = vld [vmem:[%s15 + $0x48] sm:$0xff]
    %v670 = vld [vmem:[%s15 + $0x50] sm:$0xff]
    %v671 = vld [vmem:[%s15 + $0x58] sm:$0xff]
    %v672 = vld [vmem:[%s15 + $0x60] sm:$0xff]
    %v673 = vld [vmem:[%s15 + $0x68] sm:$0xff]
    %v674 = vld [vmem:[%s15 + $0x70] sm:$0xff]
    %v675 = vld [vmem:[%s15 + $0x78] sm:$0xff]
    %676 = vmatpush.msra.mxu0 %v675
    %677 = vmatpush.msra.mxu0 %v674
    %678 = vmatpush.msra.mxu0 %v673
    %679 = vmatpush.msra.mxu0 %v672
    %680 = vmatpush.msra.mxu0 %v671
    %681 = vmatpush.msra.mxu0 %v670
    %682 = vmatpush.msra.mxu0 %v669
    %683 = vmatpush.msra.mxu0 %v668
    %684 = vmatpush.msra.mxu0 %v667
    %685 = vmatpush.msra.mxu0 %v666
    %686 = vmatpush.msra.mxu0 %v665
    %687 = vmatpush.msra.mxu0 %v664
    %688 = vmatpush.msra.mxu0 %v663
    %689 = vmatpush.msra.mxu0 %v662
    %690 = vmatpush.msra.mxu0 %v661
    %691 = vmatpush.msra.mxu0 %v660
    %692 = vmatmul.f32.gmra.mxu0 %v659
    %v693 = vpop.f32.mrf.mxu0
    %v694 = vadd.f32 0.0, %v693
    %695 = vdwg.mxu0
    %v696 = vld [vmem:[%s16] sm:$0xff]
    %v697 = vld [vmem:[%s16 + $0x8] sm:$0xff]
    %v698 = vld [vmem:[%s16 + $0x10] sm:$0xff]
    %v699 = vld [vmem:[%s16 + $0x18] sm:$0xff]
    %v701 = vsel %vm99, %v694, 0
    %703 = vmatpush.msra.mxu0 0.0
    %704 = vmatpush.msra.mxu0 0.0
    %705 = vmatpush.msra.mxu0 0.0
    %706 = vmatpush.msra.mxu0 0.0
    %707 = vmatpush.msra.mxu0 0.0
    %708 = vmatpush.msra.mxu0 0.0
    %709 = vmatpush.msra.mxu0 0.0
    %710 = vmatpush.msra.mxu0 0.0
    %711 = vmatpush.msra.mxu0 0.0
    %712 = vmatpush.msra.mxu0 0.0
    %713 = vmatpush.msra.mxu0 0.0
    %714 = vmatpush.msra.mxu0 0.0
    %715 = vmatpush.msra.mxu0 %v699
    %716 = vmatpush.msra.mxu0 %v698
    %717 = vmatpush.msra.mxu0 %v697
    %718 = vmatpush.msra.mxu0 %v696
    %719 = vmatmul.f32.gmra.mxu0 %v701
    %v720 = vpop.f32.mrf.mxu0
    %v721 = vadd.f32 0.0, %v720
    %722 = vdwg.mxu0
    %v723 = vld [vmem:[%s17] sm:$0xff]
    %v724 = vld [vmem:[%s17 + $0x8] sm:$0xff]
    %v725 = vld [vmem:[%s17 + $0x10] sm:$0xff]
    %v726 = vld [vmem:[%s17 + $0x18] sm:$0xff]
    %727 = vmatpush.msra.mxu0 0.0
    %728 = vmatpush.msra.mxu0 0.0
    %729 = vmatpush.msra.mxu0 0.0
    %730 = vmatpush.msra.mxu0 0.0
    %731 = vmatpush.msra.mxu0 0.0
    %732 = vmatpush.msra.mxu0 0.0
    %733 = vmatpush.msra.mxu0 0.0
    %734 = vmatpush.msra.mxu0 0.0
    %735 = vmatpush.msra.mxu0 0.0
    %736 = vmatpush.msra.mxu0 0.0
    %737 = vmatpush.msra.mxu0 0.0
    %738 = vmatpush.msra.mxu0 0.0
    %739 = vmatpush.msra.mxu0 %v726
    %740 = vmatpush.msra.mxu0 %v725
    %741 = vmatpush.msra.mxu0 %v724
    %742 = vmatpush.msra.mxu0 %v723
    %743 = vmatmul.f32.gmra.mxu0 %v501
    %v744 = vpop.f32.mrf.mxu0
    %v745 = vadd.f32 0.0, %v744
    %746 = vdwg.mxu0
    %v747 = vld [vmem:[%s18] sm:$0xff]
    %v748 = vld [vmem:[%s18 + $0x8] sm:$0xff]
    %v749 = vld [vmem:[%s18 + $0x10] sm:$0xff]
    %v750 = vld [vmem:[%s18 + $0x18] sm:$0xff]
    %v752 = vsel %vm99, %v721, 0
    %754 = vmatpush.msra.mxu0 0.0
    %755 = vmatpush.msra.mxu0 0.0
    %756 = vmatpush.msra.mxu0 0.0
    %757 = vmatpush.msra.mxu0 0.0
    %758 = vmatpush.msra.mxu0 0.0
    %759 = vmatpush.msra.mxu0 0.0
    %760 = vmatpush.msra.mxu0 0.0
    %761 = vmatpush.msra.mxu0 0.0
    %762 = vmatpush.msra.mxu0 0.0
    %763 = vmatpush.msra.mxu0 0.0
    %764 = vmatpush.msra.mxu0 0.0
    %765 = vmatpush.msra.mxu0 0.0
    %766 = vmatpush.msra.mxu0 %v750
    %767 = vmatpush.msra.mxu0 %v749
    %768 = vmatpush.msra.mxu0 %v748
    %769 = vmatpush.msra.mxu0 %v747
    %770 = vmatmul.f32.gmra.mxu0 %v752
    %v771 = vpop.f32.mrf.mxu0
    %v772 = vadd.f32 0.0, %v771
    %773 = vdwg.mxu0
    %v774 = vadd.f32 %v745, %v772
    %v775 = vxor.u32 %v774, 2147483648
    %v776 = vmul.f32 %v775, 1.442695
    %v777 = vpow.pop %v776
    %v778 = vadd.f32 %v777, 1.0
    %v779 = vrcp.pop %v778
    %v780 = vmul.f32 %v778, %v779
    %v781 = vsub.f32 1.0, %v780
    %v782 = vmul.f32 %v779, %v781
    %v783 = vadd.f32 %v779, %v782
    %vm784 = vweird.f32 %v778
    %vm785 = vweird.f32 %v779
    %vm786 = vmor %vm784, %vm785
    %v787 = vsel %vm786, %v779, %v783
    %v788 = vand.u32 2147483647, %v778
    %vm789 = vcmp.eq.f32.partialorder %v788, 8.507059e+37
    %v790 = vand.u32 %v778, 2147483648
    %v791 = vor.u32 1.1754944e-38, %v790
    %v792 = vsel %vm789, %v791, %v787
    %v793 = vmul.f32 1.0, %v792
    %794 = vrot.lane.b32.xlu0 %v721, 32
    %v795 = vpop.permute.xlu0 %794
    %v797 = vmul.f32 %v793, %v795
    %v798 = vld [vmem:[%s19] sm:$0xff]
    %v799 = vld [vmem:[%s19 + $0x8] sm:$0xff]
    %v800 = vld [vmem:[%s19 + $0x10] sm:$0xff]
    %v801 = vld [vmem:[%s19 + $0x18] sm:$0xff]
    %803 = vrot.lane.b32.xlu0 %v797, 96
    %v804 = vpop.permute.xlu0 %803
    %v805 = vsel %vm99, %v804, 0
    %807 = vmatpush.msra.mxu0 0.0
    %808 = vmatpush.msra.mxu0 0.0
    %809 = vmatpush.msra.mxu0 0.0
    %810 = vmatpush.msra.mxu0 0.0
    %811 = vmatpush.msra.mxu0 0.0
    %812 = vmatpush.msra.mxu0 0.0
    %813 = vmatpush.msra.mxu0 0.0
    %814 = vmatpush.msra.mxu0 0.0
    %815 = vmatpush.msra.mxu0 0.0
    %816 = vmatpush.msra.mxu0 0.0
    %817 = vmatpush.msra.mxu0 0.0
    %818 = vmatpush.msra.mxu0 0.0
    %819 = vmatpush.msra.mxu0 %v801
    %820 = vmatpush.msra.mxu0 %v800
    %821 = vmatpush.msra.mxu0 %v799
    %822 = vmatpush.msra.mxu0 %v798
    %823 = vmatmul.f32.gmra.mxu0 %v805
    %v824 = vpop.f32.mrf.mxu0
    %v825 = vadd.f32 0.0, %v824
    %826 = vdwg.mxu0
    %828 = vrot.lane.b32.xlu0 %v825, 64
    %v829 = vpop.permute.xlu0 %828
    %v831 = vadd.f32 %v745, %v829
    %v832 = vtanh.pop %v831
    %v833 = vsub.f32 1.0, %v793
    %v834 = vmul.f32 %v833, %v721
    %836 = vrot.lane.b32.xlu0 %v832, 64
    %v837 = vpop.permute.xlu0 %836
    %v839 = vmul.f32 %v793, %v837
    %v840 = vadd.f32 %v834, %v839
    %v841 = vxor.u32 %v721, 2147483648
    %v842 = vmul.f32 %v841, 1.442695
    %v843 = vpow.pop %v842
    %v844 = vadd.f32 %v843, 1.0
    %v845 = vrcp.pop %v844
    %v846 = vmul.f32 %v844, %v845
    %v847 = vsub.f32 1.0, %v846
    %v848 = vmul.f32 %v845, %v847
    %v849 = vadd.f32 %v845, %v848
    %vm850 = vweird.f32 %v844
    %vm851 = vweird.f32 %v845
    %vm852 = vmor %vm850, %vm851
    %v853 = vsel %vm852, %v845, %v849
    %v854 = vand.u32 2147483647, %v844
    %vm855 = vcmp.eq.f32.partialorder %v854, 8.507059e+37
    %v856 = vand.u32 %v844, 2147483648
    %v857 = vor.u32 1.1754944e-38, %v856
    %v858 = vsel %vm855, %v857, %v853
    %v859 = vmul.f32 1.0, %v858
    %v860 = vmul.f32 %v840, %v859
    %v861 = vld [vmem:[%s20] sm:$0xff]
    %v862 = vld [vmem:[%s20 + $0x8] sm:$0xff]
    %v863 = vld [vmem:[%s20 + $0x10] sm:$0xff]
    %v864 = vld [vmem:[%s20 + $0x18] sm:$0xff]
    %v865 = vld [vmem:[%s21] sm:$0x1]
    %v867 = vperm.slane %v865, 0
    %v870 = vsel %vm99, %v860, 0
    %872 = vmatpush.msra.mxu0 0.0
    %873 = vmatpush.msra.mxu0 0.0
    %874 = vmatpush.msra.mxu0 0.0
    %875 = vmatpush.msra.mxu0 0.0
    %876 = vmatpush.msra.mxu0 0.0
    %877 = vmatpush.msra.mxu0 0.0
    %878 = vmatpush.msra.mxu0 0.0
    %879 = vmatpush.msra.mxu0 0.0
    %880 = vmatpush.msra.mxu0 0.0
    %881 = vmatpush.msra.mxu0 0.0
    %882 = vmatpush.msra.mxu0 0.0
    %883 = vmatpush.msra.mxu0 0.0
    %884 = vmatpush.msra.mxu0 %v864
    %885 = vmatpush.msra.mxu0 %v863
    %886 = vmatpush.msra.mxu0 %v862
    %887 = vmatpush.msra.mxu0 %v861
    %888 = vmatmul.f32.gmra.mxu0 %v870
    %v889 = vpop.f32.mrf.mxu0
    %v890 = vadd.f32 %v867, %v889
    %891 = vdwg.mxu0
    %892 = vst.msk [vmem:[#allocation2] sm:$0xff] %vm99, %v890
    // Predicated region
    $region90: #{tpu_custom_call.1} parent=1 // pred_check
      _
    $region91: #{tpu_custom_call.1} parent=1 // pred_check_branch
      %894 = sbr.rel (0) target = $region93
    $region92: #{tpu_custom_call.1} parent=1 // pred_region
      %896 = vsyncadd [#allocation3], 0
      %s898 = sshll.u32 [#allocation2], 4
      %s899 = int_to_ptr.vmem [resolvable:$true] %s898
      %s900 = sshll.u32 %s22, 4
      %s901 = int_to_ptr.hbm [resolvable:$true] %s900
      %903 = dma.vmem_to_hbm [thread:$0]  %s899, 128, %s901, [#allocation3]
    $region93: #{tpu_custom_call.1} parent=1 // pred_fallthru
      _
    // Predicated region
    $region94: #{tpu_custom_call.1} parent=1 // pred_check
      _
    $region95: #{tpu_custom_call.1} parent=1 // pred_check_branch
      %905 = sbr.rel (0) target = $region97
    $region96: #{tpu_custom_call.1} parent=1 // pred_region
      %907 = dma.done [#allocation3], 128
    $region97: #{tpu_custom_call.1} parent=1 // pred_fallthru
      _
    %908 = vsyncpa [#allocation3], 1

</llo_original>
